<compile_context>
chip_gen: v7x
topology: tpu7x:2x2x1
jax: 0.10.0
libtpu: 0.0.40
codegen_flags: <defaults>
</compile_context>

<pallas_src>
import jax
import jax.numpy as jnp
from jax.experimental import pallas as pl
from jax.experimental.pallas import tpu as pltpu

NEG_SLOPE = 0.1


def _make_dkconv_kernel(NB, C, H, W, k):
    """Build the per-grid-step DKconv kernel (closure over static shapes)."""
    pad = k // 2
    HW = H * W
    K = C * k * k
    LEAD = pad + pad * W                    # front guard + top H-pad rows (flattened)
    FLAT = (H + 2 * pad) * W + 2 * pad      # flattened H-padded image + front/back guards
    TRAIL = FLAT - LEAD - HW                # bottom H-pad rows + back guard

    def kernel(x_ref, w_ref, b_ref, m_ref, o_ref, xflat_ref, patch_ref):
        # x_ref    : (NB, C, HW)   NB batch elements, NCHW flattened (input dtype)
        # w_ref    : (C, K)        bf16 weights, K ordered (dh, dw, ci)
        # b_ref    : (C, 1)        f32 bias
        # m_ref    : (k, HW)       bf16 0/1 W-border validity mask, one row per dw
        # o_ref    : (NB, C, HW)   output (NCHW flattened)
        # xflat_ref: (NB, C, FLAT) bf16 scratch: flat zero-padded images
        # patch_ref: (K, NB*HW)    bf16 scratch: im2col patches (spatial on lanes)

        # ---- one-time zeroing of the pad borders ----
        # Scratch persists across grid iterations and the interior is fully
        # overwritten every step, so only the H-pad rows + guards are zeroed,
        # and only on the first step.
        if pad > 0:
            @pl.when(pl.program_id(0) == 0)
            def _():
                xflat_ref[:, :, pl.ds(0, LEAD)] = jnp.zeros(
                    (NB, C, LEAD), xflat_ref.dtype)
                xflat_ref[:, :, pl.ds(LEAD + HW, TRAIL)] = jnp.zeros(
                    (NB, C, TRAIL), xflat_ref.dtype)

        # ---- interior copy: single cast to bf16 (no-op if x already bf16) ----
        xflat_ref[:, :, pl.ds(LEAD, HW)] = x_ref[...].astype(xflat_ref.dtype)

        # ---- im2col: one (C, HW) slab per tap per folded batch element ----
        # xflat[b, ci, (dh*W + dw) + m] == padded_x[b, ci, h + dh, w + dw - pad]
        # for m = h*W + w; wrap-around reads across W rows are zeroed by the
        # precomputed mask row for this dw.
        for dh in range(k):
            for dw in range(k):
                row0 = (dh * k + dw) * C
                for b in range(NB):
                    slab = xflat_ref[b, :, pl.ds(dh * W + dw, HW)]     # (C, HW)
                    if dw != pad:
                        slab = slab * m_ref[pl.ds(dw, 1), :]           # bf16 0/1 mul
                    patch_ref[pl.ds(row0, C), pl.ds(b * HW, HW)] = slab

        # ---- single MXU matmul: (C, K) x (K, NB*HW), f32 accumulation ----
        acc = jnp.dot(w_ref[...], patch_ref[...],
                      preferred_element_type=jnp.float32)

        # ---- bias + LeakyReLU in f32 on the VPU; lane-dense epilogue ----
        acc = acc + b_ref[...]
        acc = jnp.maximum(acc, NEG_SLOPE * acc)   # LeakyReLU (valid: 0 < slope < 1)

        # ---- per-batch lane-slice stores (HW is a multiple of 128 here) ----
        for b in range(NB):
            o_ref[b] = acc[:, b * HW:(b + 1) * HW].astype(o_ref.dtype)

    return kernel


def _default_batch_fold(N):
    # Keep >=2 grid steps when possible so a 2-TC chip (v7x) can split the
    # "parallel" batch axis across cores; fold the remaining batch into the
    # matmul lane dimension (amortizes per-step overhead on single-TC v5e/v6e).
    if N <= 2:
        return 1
    for nb in range(N // 2, 0, -1):
        if N % nb == 0:
            return nb
    return 1


def dkconv_pallas(x_nchw, weight_oihw, bias, kernel_size, batch_per_step=None):
    """DKconv forward: Conv2d(C, C, k, stride=1, padding=k//2) + LeakyReLU(0.1).

    x_nchw      : (N, C, H, W)       -- PyTorch NCHW layout
    weight_oihw : (Cout, Cin, k, k)  -- PyTorch OIHW layout
    bias        : (Cout,)
    """
    N, C, H, W = x_nchw.shape
    k = kernel_size
    # Same-size output only holds for odd k (PyTorch gives H+1 x W+1 for even k).
    assert k % 2 == 1, "dkconv_pallas assumes odd kernel_size"
    assert weight_oihw.shape == (C, C, k, k)

    pad = k // 2
    HW = H * W
    K = C * k * k
    FLAT = (H + 2 * pad) * W + 2 * pad

    nb = _default_batch_fold(N) if batch_per_step is None else batch_per_step
    assert N % nb == 0, "batch_per_step must divide N"
    grid = (N // nb,)

    # Free layout plumbing only (no HBM transpose/pad passes on the big tensor):
    x_flat = x_nchw.reshape(N, C, HW)          # NCHW row-major == (N, C, H*W)
    # K ordered (dh, dw, ci) so each im2col tap is one contiguous (C, HW) row block.
    w_mat = weight_oihw.transpose(0, 2, 3, 1).reshape(C, K).astype(jnp.bfloat16)
    b_col = bias.reshape(C, 1).astype(jnp.float32)

    # Precomputed W-border validity masks: row dw is 1 where 0 <= w + dw - pad < W.
    col = jnp.arange(HW, dtype=jnp.int32) % W
    mask_tbl = jnp.stack(
        [((col + (dw - pad) >= 0) & (col + (dw - pad) < W)).astype(jnp.bfloat16)
         for dw in range(k)],
        axis=0)                                # (k, HW), a few KB, stays resident

    kernel = _make_dkconv_kernel(nb, C, H, W, k)

    out_flat = pl.pallas_call(
        kernel,
        out_shape=jax.ShapeDtypeStruct((N, C, HW), x_nchw.dtype),
        grid_spec=pltpu.PrefetchScalarGridSpec(
            num_scalar_prefetch=0,
            grid=grid,
            in_specs=[
                pl.BlockSpec((nb, C, HW), lambda g: (g, 0, 0)),
                pl.BlockSpec((C, K), lambda g: (0, 0)),
                pl.BlockSpec((C, 1), lambda g: (0, 0)),
                pl.BlockSpec((k, HW), lambda g: (0, 0)),
            ],
            out_specs=pl.BlockSpec((nb, C, HW), lambda g: (g, 0, 0)),
            scratch_shapes=[
                pltpu.VMEM((nb, C, FLAT), jnp.bfloat16),   # flat zero-padded images
                pltpu.VMEM((K, nb * HW), jnp.bfloat16),    # im2col patches
            ],
        ),
        compiler_params=pltpu.CompilerParams(
            dimension_semantics=("parallel",),
            vmem_limit_bytes=32 * 1024 * 1024,
        ),
    )(x_flat, w_mat, b_col, mask_tbl)

    # (N, C, H*W) -> (N, C, H, W): same memory layout, free reshape.
    return out_flat.reshape(N, C, H, W)


def dkconv_reference(x_nchw, weight_oihw, bias, kernel_size):
    """Pure-JAX reference (lax conv) for correctness checking."""
    pad = kernel_size // 2
    y = jax.lax.conv_general_dilated(
        x_nchw.astype(jnp.float32),
        weight_oihw.astype(jnp.float32),
        window_strides=(1, 1),
        padding=((pad, pad), (pad, pad)),
        dimension_numbers=("NCHW", "OIHW", "NCHW"),
    )
    y = y + bias.astype(jnp.float32)[None, :, None, None]
    return jnp.where(y >= 0, y, NEG_SLOPE * y)


if __name__ == "__main__":
    key = jax.random.PRNGKey(0)
    k_x, k_w, k_b = jax.random.split(key, 3)

    # Small shapes consistent with DKconv(channels=4, kernal_size=3).
    N, C, H, W = 2, 4, 16, 16
    kernel_size = 3

    x = jax.random.normal(k_x, (N, C, H, W), dtype=jnp.float32)
    weight = jax.random.normal(k_w, (C, C, kernel_size, kernel_size),
                               dtype=jnp.float32) * 0.1
    bias = jax.random.normal(k_b, (C,), dtype=jnp.float32) * 0.1

    out = dkconv_pallas(x, weight, bias, kernel_size)
    out = jax.block_until_ready(out)
    assert out.shape == (N, C, H, W)

    # Kernel feeds bf16 to the MXU (f32 accumulation):
    #  - tight check against a reference with identically bf16-rounded inputs,
    #  - bf16-level tolerance against the pure-f32 reference.
    ref_bf16 = dkconv_reference(
        x.astype(jnp.bfloat16).astype(jnp.float32),
        weight.astype(jnp.bfloat16).astype(jnp.float32),
        bias, kernel_size)
    ref_f32 = dkconv_reference(x, weight, bias, kernel_size)
    assert jnp.allclose(out, ref_bf16, atol=1e-4, rtol=1e-4), "mismatch vs bf16 reference"
    assert jnp.allclose(out, ref_f32, atol=5e-2, rtol=5e-2), "mismatch vs f32 reference"

    print("KERNEL_OK")
</pallas_src>

<mosaic_0001>
module attributes {stable_mosaic.version = 11 : i64} {
  func.func @kernel(%arg0: i32, %arg1: memref<1x4x256xf32, #tpu.memory_space<vmem>>, %arg2: memref<4x36xbf16, #tpu.memory_space<vmem>>, %arg3: memref<4x1xf32, #tpu.memory_space<vmem>>, %arg4: memref<3x256xbf16, #tpu.memory_space<vmem>>, %arg5: memref<1x4x256xf32, #tpu.memory_space<vmem>>, %arg6: memref<1x4x290xbf16, #tpu.memory_space<vmem>>, %arg7: memref<36x256xbf16, #tpu.memory_space<vmem>>) attributes {dimension_semantics = [#tpu.dimension_semantics<parallel>], iteration_bounds = array<i64: 2>, scalar_prefetch = 0 : i64, scratch_operands = 2 : i64, tpu.core_type = #tpu.core_type<tc>, window_params = [{transform_indices = @transform_0, window_bounds = array<i64: 1, 4, 256>}, {pipeline_mode = #tpu.pipeline_mode<synchronous>, transform_indices = @transform_1, window_bounds = array<i64: 4, 36>}, {pipeline_mode = #tpu.pipeline_mode<synchronous>, transform_indices = @transform_2, window_bounds = array<i64: 4, 1>}, {pipeline_mode = #tpu.pipeline_mode<synchronous>, transform_indices = @transform_3, window_bounds = array<i64: 3, 256>}, {transform_indices = @transform_4, window_bounds = array<i64: 1, 4, 256>}]} {
    %c0_i32 = arith.constant 0 : i32
    %0 = arith.cmpi eq, %arg0, %c0_i32 : i32
    %1 = arith.extui %0 : i1 to i32
    %c0_i32_0 = arith.constant 0 : i32
    %2 = arith.cmpi ne, %1, %c0_i32_0 : i32
    scf.if %2 {
      %cst_59 = arith.constant 0.000000e+00 : bf16
      %63 = vector.broadcast %cst_59 : bf16 to vector<1x4x17xbf16>
      %c0_60 = arith.constant 0 : index
      %c0_61 = arith.constant 0 : index
      %c0_62 = arith.constant 0 : index
      %64 = vector.load %arg6[%c0_60, %c0_61, %c0_62] : memref<1x4x290xbf16, #tpu.memory_space<vmem>>, vector<1x4x17xbf16>
      tpu.vector_store %arg6[%c0_60, %c0_61, %c0_62], %63 {strides = array<i32>} : memref<1x4x290xbf16, #tpu.memory_space<vmem>>, vector<1x4x17xbf16>,
      %cst_63 = arith.constant 0.000000e+00 : bf16
      %65 = vector.broadcast %cst_63 : bf16 to vector<1x4x17xbf16>
      %c0_64 = arith.constant 0 : index
      %c0_65 = arith.constant 0 : index
      %c273 = arith.constant 273 : index
      %66 = vector.load %arg6[%c0_64, %c0_65, %c273] : memref<1x4x290xbf16, #tpu.memory_space<vmem>>, vector<1x4x17xbf16>
      tpu.vector_store %arg6[%c0_64, %c0_65, %c273], %65 {strides = array<i32>} : memref<1x4x290xbf16, #tpu.memory_space<vmem>>, vector<1x4x17xbf16>,
    } else {
    }
    %c0 = arith.constant 0 : index
    %c0_1 = arith.constant 0 : index
    %c0_2 = arith.constant 0 : index
    %3 = vector.load %arg1[%c0, %c0_1, %c0_2] : memref<1x4x256xf32, #tpu.memory_space<vmem>>, vector<1x4x256xf32>
    %4 = arith.truncf %3 : vector<1x4x256xf32> to vector<1x4x256xbf16>
    %c0_3 = arith.constant 0 : index
    %c0_4 = arith.constant 0 : index
    %c17 = arith.constant 17 : index
    %5 = vector.load %arg6[%c0_3, %c0_4, %c17] : memref<1x4x290xbf16, #tpu.memory_space<vmem>>, vector<1x4x256xbf16>
    tpu.vector_store %arg6[%c0_3, %c0_4, %c17], %4 {strides = array<i32>} : memref<1x4x290xbf16, #tpu.memory_space<vmem>>, vector<1x4x256xbf16>,
    %c0_5 = arith.constant 0 : index
    %c0_6 = arith.constant 0 : index
    %c0_7 = arith.constant 0 : index
    %6 = vector.load %arg6[%c0_5, %c0_6, %c0_7] : memref<1x4x290xbf16, #tpu.memory_space<vmem>>, vector<1x4x256xbf16>
    %7 = vector.shape_cast %6 : vector<1x4x256xbf16> to vector<4x256xbf16>
    %c0_8 = arith.constant 0 : index
    %c0_9 = arith.constant 0 : index
    %8 = vector.load %arg4[%c0_8, %c0_9] : memref<3x256xbf16, #tpu.memory_space<vmem>>, vector<1x256xbf16>
    %9 = vector.broadcast %8 : vector<1x256xbf16> to vector<4x256xbf16>
    %10 = arith.mulf %7, %9 : vector<4x256xbf16>
    %c0_10 = arith.constant 0 : index
    %c0_11 = arith.constant 0 : index
    %11 = vector.load %arg7[%c0_10, %c0_11] : memref<36x256xbf16, #tpu.memory_space<vmem>>, vector<4x256xbf16>
    tpu.vector_store %arg7[%c0_10, %c0_11], %10 {strides = array<i32>} : memref<36x256xbf16, #tpu.memory_space<vmem>>, vector<4x256xbf16>,
    %c0_12 = arith.constant 0 : index
    %c0_13 = arith.constant 0 : index
    %c1 = arith.constant 1 : index
    %12 = vector.load %arg6[%c0_12, %c0_13, %c1] : memref<1x4x290xbf16, #tpu.memory_space<vmem>>, vector<1x4x256xbf16>
    %13 = vector.shape_cast %12 : vector<1x4x256xbf16> to vector<4x256xbf16>
    %c4 = arith.constant 4 : index
    %c0_14 = arith.constant 0 : index
    %14 = vector.load %arg7[%c4, %c0_14] : memref<36x256xbf16, #tpu.memory_space<vmem>>, vector<4x256xbf16>
    tpu.vector_store %arg7[%c4, %c0_14], %13 {strides = array<i32>} : memref<36x256xbf16, #tpu.memory_space<vmem>>, vector<4x256xbf16>,
    %c0_15 = arith.constant 0 : index
    %c0_16 = arith.constant 0 : index
    %c2 = arith.constant 2 : index
    %15 = vector.load %arg6[%c0_15, %c0_16, %c2] : memref<1x4x290xbf16, #tpu.memory_space<vmem>>, vector<1x4x256xbf16>
    %16 = vector.shape_cast %15 : vector<1x4x256xbf16> to vector<4x256xbf16>
    %c2_17 = arith.constant 2 : index
    %c0_18 = arith.constant 0 : index
    %17 = vector.load %arg4[%c2_17, %c0_18] : memref<3x256xbf16, #tpu.memory_space<vmem>>, vector<1x256xbf16>
    %18 = vector.broadcast %17 : vector<1x256xbf16> to vector<4x256xbf16>
    %19 = arith.mulf %16, %18 : vector<4x256xbf16>
    %c8 = arith.constant 8 : index
    %c0_19 = arith.constant 0 : index
    %20 = vector.load %arg7[%c8, %c0_19] : memref<36x256xbf16, #tpu.memory_space<vmem>>, vector<4x256xbf16>
    tpu.vector_store %arg7[%c8, %c0_19], %19 {strides = array<i32>} : memref<36x256xbf16, #tpu.memory_space<vmem>>, vector<4x256xbf16>,
    %c0_20 = arith.constant 0 : index
    %c0_21 = arith.constant 0 : index
    %c16 = arith.constant 16 : index
    %21 = vector.load %arg6[%c0_20, %c0_21, %c16] : memref<1x4x290xbf16, #tpu.memory_space<vmem>>, vector<1x4x256xbf16>
    %22 = vector.shape_cast %21 : vector<1x4x256xbf16> to vector<4x256xbf16>
    %c0_22 = arith.constant 0 : index
    %c0_23 = arith.constant 0 : index
    %23 = vector.load %arg4[%c0_22, %c0_23] : memref<3x256xbf16, #tpu.memory_space<vmem>>, vector<1x256xbf16>
    %24 = vector.broadcast %23 : vector<1x256xbf16> to vector<4x256xbf16>
    %25 = arith.mulf %22, %24 : vector<4x256xbf16>
    %c12 = arith.constant 12 : index
    %c0_24 = arith.constant 0 : index
    %26 = vector.load %arg7[%c12, %c0_24] : memref<36x256xbf16, #tpu.memory_space<vmem>>, vector<4x256xbf16>
    tpu.vector_store %arg7[%c12, %c0_24], %25 {strides = array<i32>} : memref<36x256xbf16, #tpu.memory_space<vmem>>, vector<4x256xbf16>,
    %c0_25 = arith.constant 0 : index
    %c0_26 = arith.constant 0 : index
    %c17_27 = arith.constant 17 : index
    %27 = vector.load %arg6[%c0_25, %c0_26, %c17_27] : memref<1x4x290xbf16, #tpu.memory_space<vmem>>, vector<1x4x256xbf16>
    %28 = vector.shape_cast %27 : vector<1x4x256xbf16> to vector<4x256xbf16>
    %c16_28 = arith.constant 16 : index
    %c0_29 = arith.constant 0 : index
    %29 = vector.load %arg7[%c16_28, %c0_29] : memref<36x256xbf16, #tpu.memory_space<vmem>>, vector<4x256xbf16>
    tpu.vector_store %arg7[%c16_28, %c0_29], %28 {strides = array<i32>} : memref<36x256xbf16, #tpu.memory_space<vmem>>, vector<4x256xbf16>,
    %c0_30 = arith.constant 0 : index
    %c0_31 = arith.constant 0 : index
    %c18 = arith.constant 18 : index
    %30 = vector.load %arg6[%c0_30, %c0_31, %c18] : memref<1x4x290xbf16, #tpu.memory_space<vmem>>, vector<1x4x256xbf16>
    %31 = vector.shape_cast %30 : vector<1x4x256xbf16> to vector<4x256xbf16>
    %c2_32 = arith.constant 2 : index
    %c0_33 = arith.constant 0 : index
    %32 = vector.load %arg4[%c2_32, %c0_33] : memref<3x256xbf16, #tpu.memory_space<vmem>>, vector<1x256xbf16>
    %33 = vector.broadcast %32 : vector<1x256xbf16> to vector<4x256xbf16>
    %34 = arith.mulf %31, %33 : vector<4x256xbf16>
    %c20 = arith.constant 20 : index
    %c0_34 = arith.constant 0 : index
    %35 = vector.load %arg7[%c20, %c0_34] : memref<36x256xbf16, #tpu.memory_space<vmem>>, vector<4x256xbf16>
    tpu.vector_store %arg7[%c20, %c0_34], %34 {strides = array<i32>} : memref<36x256xbf16, #tpu.memory_space<vmem>>, vector<4x256xbf16>,
    %c0_35 = arith.constant 0 : index
    %c0_36 = arith.constant 0 : index
    %c32 = arith.constant 32 : index
    %36 = vector.load %arg6[%c0_35, %c0_36, %c32] : memref<1x4x290xbf16, #tpu.memory_space<vmem>>, vector<1x4x256xbf16>
    %37 = vector.shape_cast %36 : vector<1x4x256xbf16> to vector<4x256xbf16>
    %c0_37 = arith.constant 0 : index
    %c0_38 = arith.constant 0 : index
    %38 = vector.load %arg4[%c0_37, %c0_38] : memref<3x256xbf16, #tpu.memory_space<vmem>>, vector<1x256xbf16>
    %39 = vector.broadcast %38 : vector<1x256xbf16> to vector<4x256xbf16>
    %40 = arith.mulf %37, %39 : vector<4x256xbf16>
    %c24 = arith.constant 24 : index
    %c0_39 = arith.constant 0 : index
    %41 = vector.load %arg7[%c24, %c0_39] : memref<36x256xbf16, #tpu.memory_space<vmem>>, vector<4x256xbf16>
    tpu.vector_store %arg7[%c24, %c0_39], %40 {strides = array<i32>} : memref<36x256xbf16, #tpu.memory_space<vmem>>, vector<4x256xbf16>,
    %c0_40 = arith.constant 0 : index
    %c0_41 = arith.constant 0 : index
    %c33 = arith.constant 33 : index
    %42 = vector.load %arg6[%c0_40, %c0_41, %c33] : memref<1x4x290xbf16, #tpu.memory_space<vmem>>, vector<1x4x256xbf16>
    %43 = vector.shape_cast %42 : vector<1x4x256xbf16> to vector<4x256xbf16>
    %c28 = arith.constant 28 : index
    %c0_42 = arith.constant 0 : index
    %44 = vector.load %arg7[%c28, %c0_42] : memref<36x256xbf16, #tpu.memory_space<vmem>>, vector<4x256xbf16>
    tpu.vector_store %arg7[%c28, %c0_42], %43 {strides = array<i32>} : memref<36x256xbf16, #tpu.memory_space<vmem>>, vector<4x256xbf16>,
    %c0_43 = arith.constant 0 : index
    %c0_44 = arith.constant 0 : index
    %c34 = arith.constant 34 : index
    %45 = vector.load %arg6[%c0_43, %c0_44, %c34] : memref<1x4x290xbf16, #tpu.memory_space<vmem>>, vector<1x4x256xbf16>
    %46 = vector.shape_cast %45 : vector<1x4x256xbf16> to vector<4x256xbf16>
    %c2_45 = arith.constant 2 : index
    %c0_46 = arith.constant 0 : index
    %47 = vector.load %arg4[%c2_45, %c0_46] : memref<3x256xbf16, #tpu.memory_space<vmem>>, vector<1x256xbf16>
    %48 = vector.broadcast %47 : vector<1x256xbf16> to vector<4x256xbf16>
    %49 = arith.mulf %46, %48 : vector<4x256xbf16>
    %c32_47 = arith.constant 32 : index
    %c0_48 = arith.constant 0 : index
    %50 = vector.load %arg7[%c32_47, %c0_48] : memref<36x256xbf16, #tpu.memory_space<vmem>>, vector<4x256xbf16>
    tpu.vector_store %arg7[%c32_47, %c0_48], %49 {strides = array<i32>} : memref<36x256xbf16, #tpu.memory_space<vmem>>, vector<4x256xbf16>,
    %c0_49 = arith.constant 0 : index
    %c0_50 = arith.constant 0 : index
    %51 = vector.load %arg2[%c0_49, %c0_50] : memref<4x36xbf16, #tpu.memory_space<vmem>>, vector<4x36xbf16>
    %c0_51 = arith.constant 0 : index
    %c0_52 = arith.constant 0 : index
    %52 = vector.load %arg7[%c0_51, %c0_52] : memref<36x256xbf16, #tpu.memory_space<vmem>>, vector<36x256xbf16>
    %cst = arith.constant dense<0.000000e+00> : vector<4x256xf32>
    %53 = tpu.matmul %51, %52, %cst {dimension_numbers = #tpu.dot_dimension_numbers<[1], [0], [0], [1], [0, 0, 1, 1], [], []>} : vector<4x36xbf16>, vector<36x256xbf16>, vector<4x256xf32> -> vector<4x256xf32>
    %c0_53 = arith.constant 0 : index
    %c0_54 = arith.constant 0 : index
    %54 = vector.load %arg3[%c0_53, %c0_54] : memref<4x1xf32, #tpu.memory_space<vmem>>, vector<4x1xf32>
    %55 = vector.broadcast %54 : vector<4x1xf32> to vector<4x256xf32>
    %56 = arith.addf %53, %55 : vector<4x256xf32>
    %cst_55 = arith.constant 1.000000e-01 : f32
    %57 = vector.broadcast %cst_55 : f32 to vector<4x256xf32>
    %58 = arith.mulf %57, %56 : vector<4x256xf32>
    %59 = arith.maximumf %56, %58 : vector<4x256xf32>
    %c0_56 = arith.constant 0 : index
    %c0_57 = arith.constant 0 : index
    %c0_58 = arith.constant 0 : index
    %60 = vector.load %arg5[%c0_56, %c0_57, %c0_58] : memref<1x4x256xf32, #tpu.memory_space<vmem>>, vector<1x4x256xf32>
    %61 = vector.shape_cast %60 : vector<1x4x256xf32> to vector<4x256xf32>
    %62 = vector.shape_cast %59 : vector<4x256xf32> to vector<1x4x256xf32>
    tpu.vector_store %arg5[%c0_56, %c0_57, %c0_58], %62 {strides = array<i32>} : memref<1x4x256xf32, #tpu.memory_space<vmem>>, vector<1x4x256xf32>,
    return
  }
  func.func @transform_0(%arg0: i32) -> (i32, i32, i32) {
    %c0_i32 = arith.constant 0 : i32
    %c0_i32_0 = arith.constant 0 : i32
    %c0_i32_1 = arith.constant 0 : i32
    return %arg0, %c0_i32, %c0_i32_0 : i32, i32, i32
  }
  func.func @transform_1(%arg0: i32) -> (i32, i32) {
    %c0_i32 = arith.constant 0 : i32
    %c0_i32_0 = arith.constant 0 : i32
    %c0_i32_1 = arith.constant 0 : i32
    return %c0_i32, %c0_i32_0 : i32, i32
  }
  func.func @transform_2(%arg0: i32) -> (i32, i32) {
    %c0_i32 = arith.constant 0 : i32
    %c0_i32_0 = arith.constant 0 : i32
    %c0_i32_1 = arith.constant 0 : i32
    return %c0_i32, %c0_i32_0 : i32, i32
  }
  func.func @transform_3(%arg0: i32) -> (i32, i32) {
    %c0_i32 = arith.constant 0 : i32
    %c0_i32_0 = arith.constant 0 : i32
    %c0_i32_1 = arith.constant 0 : i32
    return %c0_i32, %c0_i32_0 : i32, i32
  }
  func.func @transform_4(%arg0: i32) -> (i32, i32, i32) {
    %c0_i32 = arith.constant 0 : i32
    %c0_i32_0 = arith.constant 0 : i32
    %c0_i32_1 = arith.constant 0 : i32
    return %arg0, %c0_i32, %c0_i32_0 : i32, i32, i32
  }
}

</mosaic_0001>

<llo_original>
// kernel: tpu_custom_call.1
$region0: #{tpu_custom_call.1}
  #allocation0 [shape = 'u32[]', space=smem, size = 0x4, offset = 0x4, fixed_abs, tag = 'smem constant byte address 0x4 - core index']
  #allocation1 [shape = 'u32[144,128]{1,0:T(1,128)}', space=vmem, size = 0x12000, scoped, tag = 'internal scratch']
  #allocation2 [shape = 'bf16[1,4,290]{2,1,0:T(4,128)(2,1)}', space=vmem, size = 0xc00, scoped, tag = 'scratch operand']
  #allocation3 [shape = 'bf16[36,256]{1,0:T(8,128)(2,1)}', space=vmem, size = 0x5000, scoped, tag = 'scratch operand']
  %s0 = inlined_call_operand.hbm [shape: f32[2,4,256], index: 0, kind: input, shape index: {}]
  %s1 = inlined_call_operand.vmem [shape: bf16[4,36], index: 1, kind: input, shape index: {}]
  %s2 = inlined_call_operand.vmem [shape: f32[4,1], index: 2, kind: input, shape index: {}]
  %s3 = inlined_call_operand.vmem [shape: bf16[3,256], index: 3, kind: input, shape index: {}]
  %s4 = inlined_call_operand.hbm [shape: f32[2,4,256], index: 4, kind: output, shape index: {}]
  %s5 = sld [smem:[#allocation0]]
  $region57: #{tpu_custom_call.1} parent=0
    _
  %s7 = ssub.s32 1, %s5
  %s8 = scalar_select 0, %s7, %s5
  $region1: #{tpu_custom_call.1} parent=0
    #allocation4 [shape = 'u8[8192]{0}', space=vmem, size = 0x2000, scoped, tag = 'input window, operand 0']
    #allocation5 [shape = 's32[2]{0}', space=sflag, size = 0x8, scoped, tag = 'scoped memory for tpu_custom_call.1']
    #allocation6 [shape = 's32[2]{0}', space=sflag, size = 0x8, scoped, tag = 'scoped memory for tpu_custom_call.1']
    #allocation7 [shape = 'u8[8192]{0}', space=vmem, size = 0x2000, scoped, tag = 'output window, operand 0']
    %9 = vsyncpa [#allocation5], 0
    %s10 = scalar_lea.sflag [#allocation5], 1
    %11 = vsyncpa %s10, 0
    %12 = vsyncpa [#allocation6], 0
    %s13 = scalar_lea.sflag [#allocation6], 1
    %14 = vsyncpa %s13, 0
    loop: start=0, step=1, limit=4
    $region2: #{tpu_custom_call.1} parent=1 // loop_pre_header
      _
    $region3: #{tpu_custom_call.1} parent=1 // loop_header
      %s16 = sphi 0, %s20
      %p17 = scmp.ge.s32.totalorder %s16, 4
      %s26 = sphi 0, %s28
      %s29 = sphi 0, %s26
      %s30 = sphi 0, %s29
      %s46 = sphi 0, %s30
      %s50 = sphi 0, %s50
      %s52 = sphi 0, %s50
      %s53 = sphi 0, %s52
      %s67 = sphi 0, %s53
      %s71 = sphi 0, %s71
      %s73 = sphi 0, %s71
      %s74 = sphi 0, %s73
      %s88 = sphi 0, %s74
      %s92 = sphi 0, %s92
      %s94 = sphi 0, %s92
      %s95 = sphi 0, %s94
      %s109 = sphi 0, %s95
      %s115 = sphi 0, %s117
      %s118 = sphi 0, %s115
      %s119 = sphi 0, %s118
      %s135 = sphi 0, %s119
    $region4: #{tpu_custom_call.1} parent=1 // loop_header_branch
      %19 = sbr.rel (%p17) target = $region8
    $region5: #{tpu_custom_call.1} parent=1 // loop_body
      %s21 = ssub.s32 %s16, 1
      %s22 = ssub.s32 %s16, 2
      %s23 = sadd.s32 %s16, 1
      %s24 = ssub.s32 %s16, %s23
      %p25 = scmp.eq.s32.totalorder %s24, 0
      %s27 = sadd.s32 %s26, 1
      %s28 = scalar_select %p25, %s26, %s27
      %p31 = pneg %p25
      %p32 = scmp.eq.s32.totalorder %s16, 1
      %p33 = por %p31, %p32
      %p34 = scmp.ne.s32.totalorder %s26, %s29
      %p35 = scmp.eq.s32.totalorder %s16, 0
      %p36 = por %p34, %p35
      %p37 = scmp.ne.s32.totalorder %s26, %s29
      %p38 = scmp.eq.s32.totalorder %s21, 1
      %p39 = por %p37, %p38
      %p40 = scmp.ne.s32.totalorder %s29, %s30
      %p41 = scmp.eq.s32.totalorder %s21, 0
      %p42 = por %p40, %p41
      %p43 = scmp.ne.s32.totalorder %s29, %s30
      %p44 = scmp.eq.s32.totalorder %s22, 1
      %p45 = por %p43, %p44
      %p47 = scmp.ne.s32.totalorder %s30, %s46
      %p48 = scmp.eq.s32.totalorder %s22, 0
      %p49 = por %p47, %p48
      %s51 = sadd.s32 %s50, 1
      %p54 = scmp.eq.s32.totalorder %s16, 1
      %p55 = scmp.ne.s32.totalorder %s50, %s52
      %p56 = scmp.eq.s32.totalorder %s16, 0
      %p57 = por %p55, %p56
      %p58 = scmp.ne.s32.totalorder %s50, %s52
      %p59 = scmp.eq.s32.totalorder %s21, 1
      %p60 = por %p58, %p59
      %p61 = scmp.ne.s32.totalorder %s52, %s53
      %p62 = scmp.eq.s32.totalorder %s21, 0
      %p63 = por %p61, %p62
      %p64 = scmp.ne.s32.totalorder %s52, %s53
      %p65 = scmp.eq.s32.totalorder %s22, 1
      %p66 = por %p64, %p65
      %p68 = scmp.ne.s32.totalorder %s53, %s67
      %p69 = scmp.eq.s32.totalorder %s22, 0
      %p70 = por %p68, %p69
      %s72 = sadd.s32 %s71, 1
      %p75 = scmp.eq.s32.totalorder %s16, 1
      %p76 = scmp.ne.s32.totalorder %s71, %s73
      %p77 = scmp.eq.s32.totalorder %s16, 0
      %p78 = por %p76, %p77
      %p79 = scmp.ne.s32.totalorder %s71, %s73
      %p80 = scmp.eq.s32.totalorder %s21, 1
      %p81 = por %p79, %p80
      %p82 = scmp.ne.s32.totalorder %s73, %s74
      %p83 = scmp.eq.s32.totalorder %s21, 0
      %p84 = por %p82, %p83
      %p85 = scmp.ne.s32.totalorder %s73, %s74
      %p86 = scmp.eq.s32.totalorder %s22, 1
      %p87 = por %p85, %p86
      %p89 = scmp.ne.s32.totalorder %s74, %s88
      %p90 = scmp.eq.s32.totalorder %s22, 0
      %p91 = por %p89, %p90
      %s93 = sadd.s32 %s92, 1
      %p96 = scmp.eq.s32.totalorder %s16, 1
      %p97 = scmp.ne.s32.totalorder %s92, %s94
      %p98 = scmp.eq.s32.totalorder %s16, 0
      %p99 = por %p97, %p98
      %p100 = scmp.ne.s32.totalorder %s92, %s94
      %p101 = scmp.eq.s32.totalorder %s21, 1
      %p102 = por %p100, %p101
      %p103 = scmp.ne.s32.totalorder %s94, %s95
      %p104 = scmp.eq.s32.totalorder %s21, 0
      %p105 = por %p103, %p104
      %p106 = scmp.ne.s32.totalorder %s94, %s95
      %p107 = scmp.eq.s32.totalorder %s22, 1
      %p108 = por %p106, %p107
      %p110 = scmp.ne.s32.totalorder %s95, %s109
      %p111 = scmp.eq.s32.totalorder %s22, 0
      %p112 = por %p110, %p111
      %s113 = ssub.s32 %s16, %s23
      %p114 = scmp.eq.s32.totalorder %s113, 0
      %s116 = sadd.s32 %s115, 1
      %s117 = scalar_select %p114, %s115, %s116
      %p120 = pneg %p114
      %p121 = scmp.eq.s32.totalorder %s16, 1
      %p122 = por %p120, %p121
      %p123 = scmp.ne.s32.totalorder %s115, %s118
      %p124 = scmp.eq.s32.totalorder %s16, 0
      %p125 = por %p123, %p124
      %p126 = scmp.ne.s32.totalorder %s115, %s118
      %p127 = scmp.eq.s32.totalorder %s21, 1
      %p128 = por %p126, %p127
      %p129 = scmp.ne.s32.totalorder %s118, %s119
      %p130 = scmp.eq.s32.totalorder %s21, 0
      %p131 = por %p129, %p130
      %p132 = scmp.ne.s32.totalorder %s118, %s119
      %p133 = scmp.eq.s32.totalorder %s22, 1
      %p134 = por %p132, %p133
      %p136 = scmp.ne.s32.totalorder %s119, %s135
      %p137 = scmp.eq.s32.totalorder %s22, 0
      %p138 = por %p136, %p137
      %p139 = scmp.le.s32.totalorder 1, %s16
      %p140 = scmp.lt.s32.totalorder %s16, 3
      %p141 = pnand %p139, %p140
      %p142 = pneg %p141
      // Predicated region
      $region9: #{tpu_custom_call.1} parent=5 // pred_check
        _
      $region10: #{tpu_custom_call.1} parent=5 // pred_check_branch
        %144 = sbr.rel (%p141) target = $region12
      $region11: #{tpu_custom_call.1} parent=5 // pred_region
        %s145 = ssub.s32 %s16, 1
        // Predicated region
        $region13: #{tpu_custom_call.1} parent=11 // pred_check
          %p146 = pneg %p63
        $region14: #{tpu_custom_call.1} parent=11 // pred_check_branch
          %148 = sbr.rel (%p146) target = $region16
        $region15: #{tpu_custom_call.1} parent=11 // pred_region
          _
        $region16: #{tpu_custom_call.1} parent=11 // pred_fallthru
          _
        // Predicated region
        $region17: #{tpu_custom_call.1} parent=11 // pred_check
          %p149 = pneg %p84
        $region18: #{tpu_custom_call.1} parent=11 // pred_check_branch
          %151 = sbr.rel (%p149) target = $region20
        $region19: #{tpu_custom_call.1} parent=11 // pred_region
          _
        $region20: #{tpu_custom_call.1} parent=11 // pred_fallthru
          _
        // Predicated region
        $region21: #{tpu_custom_call.1} parent=11 // pred_check
          %p152 = pneg %p105
        $region22: #{tpu_custom_call.1} parent=11 // pred_check_branch
          %154 = sbr.rel (%p152) target = $region24
        $region23: #{tpu_custom_call.1} parent=11 // pred_region
          _
        $region24: #{tpu_custom_call.1} parent=11 // pred_fallthru
          _
      $region12: #{tpu_custom_call.1} parent=5 // pred_fallthru
        _
      %p155 = scmp.lt.s32.totalorder %s16, 2
      // Predicated region
      $region25: #{tpu_custom_call.1} parent=5 // pred_check
        %p156 = pneg %p155
      $region26: #{tpu_custom_call.1} parent=5 // pred_check_branch
        %158 = sbr.rel (%p156) target = $region28
      $region27: #{tpu_custom_call.1} parent=5 // pred_region
        // Predicated region
        $region29: #{tpu_custom_call.1} parent=27 // pred_check
          %p159 = pneg %p36
        $region30: #{tpu_custom_call.1} parent=27 // pred_check_branch
          %161 = sbr.rel (%p159) target = $region32
        $region31: #{tpu_custom_call.1} parent=27 // pred_region
          %s162 = sand.u32 %s26, 1
          %s163 = scalar_lea.sflag [#allocation5], %s162
          %s164 = sand.u32 %s26, 1
          %s165 = smul.addr %s164, 8
          %s166 = scalar_lea.vmem [#allocation4], %s165
          %s168 = ssub.s32 128, 128
          %169 = vsyncadd %s163, %s168
          %s170 = smul.addr %s16, 2
          %s171 = smul.addr %s170, 64
          %s172 = scalar_lea.hbm %s0, %s171
          %s174 = sshll.u32 %s166, 4
          %s175 = int_to_ptr.vmem [resolvable:$true] %s174
          %177 = dma.hbm_to_vmem [thread:$0]  %s172, 128, %s175, %s163
        $region32: #{tpu_custom_call.1} parent=27 // pred_fallthru
          _
      $region28: #{tpu_custom_call.1} parent=5 // pred_fallthru
        _
      %p178 = scmp.le.s32.totalorder 1, %s16
      %p179 = scmp.lt.s32.totalorder %s16, 3
      %p180 = pnand %p178, %p179
      %p181 = pneg %p180
      // Predicated region
      $region33: #{tpu_custom_call.1} parent=5 // pred_check
        _
      $region34: #{tpu_custom_call.1} parent=5 // pred_check_branch
        %183 = sbr.rel (%p180) target = $region36
      $region35: #{tpu_custom_call.1} parent=5 // pred_region
        %s184 = ssub.s32 %s16, 1
        %s185 = sand.u32 %s29, 1
        %s186 = scalar_lea.sflag [#allocation5], %s185
        %s187 = sand.u32 %s29, 1
        %s188 = smul.addr %s187, 8
        %s189 = scalar_lea.vmem [#allocation4], %s188
        // Predicated region
        $region37: #{tpu_custom_call.1} parent=35 // pred_check
          %p190 = pneg %p42
        $region38: #{tpu_custom_call.1} parent=35 // pred_check_branch
          %192 = sbr.rel (%p190) target = $region40
        $region39: #{tpu_custom_call.1} parent=35 // pred_region
          %193 = dma.done %s186, 128
        $region40: #{tpu_custom_call.1} parent=35 // pred_fallthru
          _
        %s194 = sand.u32 %s29, 1
        %s195 = scalar_lea.sflag [#allocation5], %s194
        %s196 = sand.u32 %s29, 1
        %s197 = smul.addr %s196, 8
        %s198 = scalar_lea.vmem [#allocation4], %s197
        %p199 = pneg %p42
        %p200 = pneg %p39
        %p201 = pneg %p63
        %p202 = pneg %p60
        %p203 = pneg %p84
        %p204 = pneg %p81
        %p205 = pneg %p105
        %p206 = pneg %p102
        %p207 = pneg %p131
        %p208 = pneg %p128
        %s209 = sand.u32 %s118, 1
        %s210 = scalar_lea.sflag [#allocation6], %s209
        %s211 = sand.u32 %s118, 1
        %s212 = smul.addr %s211, 8
        %s213 = scalar_lea.vmem [#allocation7], %s212
        %p215 = scmp.eq.s32.totalorder %s21, 0
        // Predicated region
        $region41: #{tpu_custom_call.1} parent=35 // pred_check
          %p216 = pneg %p215
        $region42: #{tpu_custom_call.1} parent=35 // pred_check_branch
          %218 = sbr.rel (%p216) target = $region44
        $region43: #{tpu_custom_call.1} parent=35 // pred_region
          %vm219 = vcmask 132096
          %220 = vst.msk [vmem:[#allocation2] sm:$0x3] %vm219, 0
          %vm221 = vcmask 271496
          %222 = vst.msk [vmem:[#allocation2 + $0x4] sm:$0x3] %vm221, 0
        $region44: #{tpu_custom_call.1} parent=35 // pred_fallthru
          _
        %v223 = vld [vmem:[%s189] sm:$0xff]
        %v225 = vcombine.high %v223, %v223
        %v227 = vpack.c.bf16 %v223, %v223
        %v228 = vpack.c.bf16 %v225, %v225
        %v231 = vcombine.low %v227, %v228
        %v233 = vunpack.c.l.s4 1983009808
        %v234 = vunpack.c.0.s8 %v233
        %v235 = vlaneseq
        %v236 = vshrl.u32 %v235, 7
        %v237 = vsub.s32 %v234, %v236
        %v238 = vrot.slane %v231, %v237
        %239 = vrot.lane.b32.xlu0 %v238, 17
        %v240 = vpop.permute.xlu0 %239
        %v241 = vrot.slane %v240, 6
        %vm242 = vcmask 138240
        %v243 = vsel %vm242, %v241, %v240
        %vm245 = vcmask 1041544
        %vm246 = vcmask 1043458
        %vm247 = vmor %vm246, %vm245
        %vm248 = vcmask 136196
        %vm249 = vmor %vm248, %vm247
        %250 = vst.msk [vmem:[#allocation2] sm:$0x3f] %vm249, %v243
        %v251 = vld [vmem:[#allocation2] sm:$0xf]
        %v252 = vld [vmem:[%s3] sm:$0x5]
        %v255 = vunpack.c.l.s4 1983009808
        %v256 = vunpack.c.0.s8 %v255
        %v257 = vlaneseq
        %v258 = vshrl.u32 %v257, 7
        %v259 = vsub.s32 %v256, %v258
        %v260 = vrot.slane %v252, %v259
        %v261 = vcombine.high %v260, %v260
        %v263 = vpack.i.b16 %v260, %v260
        %v265 = vlaneseq
        %v266 = vshrl.u32 %v265, 7
        %v267 = vsub.s32 0, %v266
        %v268 = vrot.slane %v263, %v267
        %v270 = vpack.i.b16 %v261, %v261
        %v272 = vlaneseq
        %v273 = vshrl.u32 %v272, 7
        %v274 = vsub.s32 0, %v273
        %v275 = vrot.slane %v270, %v274
        %v278 = vcombine.low %v268, %v275
        %v280 = vunpack.c.l.s4 1983009808
        %v281 = vunpack.c.0.s8 %v280
        %v282 = vlaneseq
        %v283 = vshrl.u32 %v282, 7
        %v284 = vsub.s32 %v281, %v283
        %v285 = vrot.slane %v278, %v284
        %v287 = vmul.bf16 %v251, %v285
        %v290 = vunpack.c.l.s4 1983009808
        %v291 = vunpack.c.0.s8 %v290
        %v292 = vlaneseq
        %v293 = vshrl.u32 %v292, 7
        %v294 = vsub.s32 %v291, %v293
        %v295 = vrot.slane %v287, %v294
        %297 = vst [vmem:[#allocation3] sm:$0x33] %v295
        %v298 = vld [vmem:[#allocation2] sm:$0x3f]
        %v300 = vcombine.low %v298, %v298
        %v302 = vunpack.c.l.s4 1983009808
        %v303 = vunpack.c.0.s8 %v302
        %v304 = vlaneseq
        %v305 = vshrl.u32 %v304, 7
        %v306 = vsub.s32 %v303, %v305
        %v307 = vrot.slane %v300, %v306
        %v309 = vunpack.c.l.s4 1983009808
        %v310 = vunpack.c.0.s8 %v309
        %v311 = vlaneseq
        %v312 = vshrl.u32 %v311, 7
        %v313 = vsub.s32 %v310, %v312
        %v314 = vrot.slane %v298, %v313
        %315 = vrot.lane.b32.xlu0 %v307, 127
        %v316 = vpop.permute.xlu0 %315
        %317 = vrot.lane.b32.xlu0 %v314, 127
        %v318 = vpop.permute.xlu0 %317
        %v319 = vrot.slane %v316, 4
        %v320 = vrot.slane %v318, 4
        %vm321 = vcmask 1043456
        %v322 = vsel %vm321, %v319, %v320
        %vm323 = vcmask 1039360
        %v324 = vsel %vm323, %v316, %v322
        %326 = vst [vmem:[#allocation3] sm:$0xcc] %v324
        %v327 = vld [vmem:[#allocation2] sm:$0x3f]
        %v328 = vld [vmem:[%s3] sm:$0xa]
        %v331 = vunpack.c.l.s4 1983009808
        %v332 = vunpack.c.0.s8 %v331
        %v333 = vlaneseq
        %v334 = vshrl.u32 %v333, 7
        %v335 = vsub.s32 %v332, %v334
        %v336 = vrot.slane %v328, %v335
        %v337 = vcombine.high %v336, %v336
        %v339 = vpack.i.b16 %v336, %v336
        %v341 = vlaneseq
        %v342 = vshrl.u32 %v341, 7
        %v343 = vsub.s32 1, %v342
        %v344 = vrot.slane %v339, %v343
        %v346 = vpack.i.b16 %v337, %v337
        %v348 = vlaneseq
        %v349 = vshrl.u32 %v348, 7
        %v350 = vsub.s32 1, %v349
        %v351 = vrot.slane %v346, %v350
        %v354 = vcombine.low %v344, %v351
        %v356 = vunpack.c.l.s4 1983009808
        %v357 = vunpack.c.0.s8 %v356
        %v358 = vlaneseq
        %v359 = vshrl.u32 %v358, 7
        %v360 = vsub.s32 %v357, %v359
        %v361 = vrot.slane %v354, %v360
        %362 = vrot.lane.b32.xlu0 %v361, 2
        %v363 = vpop.permute.xlu0 %362
        %v364 = vrot.slane %v363, 6
        %vm365 = vcmask 15360
        %v366 = vsel %vm365, %v364, %v363
        %v368 = vmul.bf16 %v327, %v366
        %v370 = vcombine.high %v368, %v368
        %v372 = vunpack.c.l.s4 1983009808
        %v373 = vunpack.c.0.s8 %v372
        %v374 = vlaneseq
        %v375 = vshrl.u32 %v374, 7
        %v376 = vsub.s32 %v373, %v375
        %v377 = vrot.slane %v368, %v376
        %v379 = vunpack.c.l.s4 1983009808
        %v380 = vunpack.c.0.s8 %v379
        %v381 = vlaneseq
        %v382 = vshrl.u32 %v381, 7
        %v383 = vsub.s32 %v380, %v382
        %v384 = vrot.slane %v370, %v383
        %385 = vrot.lane.b32.xlu0 %v377, 126
        %v386 = vpop.permute.xlu0 %385
        %387 = vrot.lane.b32.xlu0 %v384, 126
        %v388 = vpop.permute.xlu0 %387
        %v389 = vrot.slane %v386, 4
        %v390 = vrot.slane %v388, 4
        %v391 = vsel %vm321, %v389, %v390
        %vm392 = vcmask 1031168
        %v393 = vsel %vm392, %v386, %v391
        %395 = vst [vmem:[#allocation3 + $0x8] sm:$0x33] %v393
        %v396 = vld [vmem:[#allocation2] sm:$0x3f]
        %v397 = vld [vmem:[%s3] sm:$0x5]
        %v400 = vunpack.c.l.s4 1983009808
        %v401 = vunpack.c.0.s8 %v400
        %v402 = vlaneseq
        %v403 = vshrl.u32 %v402, 7
        %v404 = vsub.s32 %v401, %v403
        %v405 = vrot.slane %v397, %v404
        %v406 = vcombine.high %v405, %v405
        %v408 = vpack.i.b16 %v405, %v405
        %v410 = vlaneseq
        %v411 = vshrl.u32 %v410, 7
        %v412 = vsub.s32 0, %v411
        %v413 = vrot.slane %v408, %v412
        %v415 = vpack.i.b16 %v406, %v406
        %v417 = vlaneseq
        %v418 = vshrl.u32 %v417, 7
        %v419 = vsub.s32 0, %v418
        %v420 = vrot.slane %v415, %v419
        %v423 = vcombine.low %v413, %v420
        %v425 = vunpack.c.l.s4 1983009808
        %v426 = vunpack.c.0.s8 %v425
        %v427 = vlaneseq
        %v428 = vshrl.u32 %v427, 7
        %v429 = vsub.s32 %v426, %v428
        %v430 = vrot.slane %v423, %v429
        %431 = vrot.lane.b32.xlu0 %v430, 16
        %v432 = vpop.permute.xlu0 %431
        %v433 = vrot.slane %v432, 6
        %vm434 = vcmask 130048
        %v435 = vsel %vm434, %v433, %v432
        %v437 = vmul.bf16 %v396, %v435
        %v439 = vcombine.low %v437, %v437
        %v441 = vunpack.c.l.s4 1983009808
        %v442 = vunpack.c.0.s8 %v441
        %v443 = vlaneseq
        %v444 = vshrl.u32 %v443, 7
        %v445 = vsub.s32 %v442, %v444
        %v446 = vrot.slane %v439, %v445
        %v448 = vunpack.c.l.s4 1983009808
        %v449 = vunpack.c.0.s8 %v448
        %v450 = vlaneseq
        %v451 = vshrl.u32 %v450, 7
        %v452 = vsub.s32 %v449, %v451
        %v453 = vrot.slane %v437, %v452
        %454 = vrot.lane.b32.xlu0 %v446, 112
        %v455 = vpop.permute.xlu0 %454
        %456 = vrot.lane.b32.xlu0 %v453, 112
        %v457 = vpop.permute.xlu0 %456
        %v458 = vrot.slane %v455, 4
        %v459 = vrot.slane %v457, 4
        %v460 = vsel %vm321, %v458, %v459
        %vm461 = vcmask 916480
        %v462 = vsel %vm461, %v455, %v460
        %464 = vst [vmem:[#allocation3 + $0x8] sm:$0xcc] %v462
        %v465 = vld [vmem:[#allocation2] sm:$0x3f]
        %v467 = vcombine.high %v465, %v465
        %v469 = vunpack.c.l.s4 1983009808
        %v470 = vunpack.c.0.s8 %v469
        %v471 = vlaneseq
        %v472 = vshrl.u32 %v471, 7
        %v473 = vsub.s32 %v470, %v472
        %v474 = vrot.slane %v465, %v473
        %v476 = vunpack.c.l.s4 1983009808
        %v477 = vunpack.c.0.s8 %v476
        %v478 = vlaneseq
        %v479 = vshrl.u32 %v478, 7
        %v480 = vsub.s32 %v477, %v479
        %v481 = vrot.slane %v467, %v480
        %482 = vrot.lane.b32.xlu0 %v474, 111
        %v483 = vpop.permute.xlu0 %482
        %484 = vrot.lane.b32.xlu0 %v481, 111
        %v485 = vpop.permute.xlu0 %484
        %v486 = vrot.slane %v483, 4
        %v487 = vrot.slane %v485, 4
        %v488 = vsel %vm321, %v486, %v487
        %vm489 = vcmask 908288
        %v490 = vsel %vm489, %v483, %v488
        %492 = vst [vmem:[#allocation3 + $0x10] sm:$0x33] %v490
        %v493 = vld [vmem:[#allocation2] sm:$0x3f]
        %v494 = vld [vmem:[%s3] sm:$0xa]
        %v497 = vunpack.c.l.s4 1983009808
        %v498 = vunpack.c.0.s8 %v497
        %v499 = vlaneseq
        %v500 = vshrl.u32 %v499, 7
        %v501 = vsub.s32 %v498, %v500
        %v502 = vrot.slane %v494, %v501
        %v503 = vcombine.high %v502, %v502
        %v505 = vpack.i.b16 %v502, %v502
        %v507 = vlaneseq
        %v508 = vshrl.u32 %v507, 7
        %v509 = vsub.s32 1, %v508
        %v510 = vrot.slane %v505, %v509
        %v512 = vpack.i.b16 %v503, %v503
        %v514 = vlaneseq
        %v515 = vshrl.u32 %v514, 7
        %v516 = vsub.s32 1, %v515
        %v517 = vrot.slane %v512, %v516
        %v520 = vcombine.low %v510, %v517
        %v522 = vunpack.c.l.s4 1983009808
        %v523 = vunpack.c.0.s8 %v522
        %v524 = vlaneseq
        %v525 = vshrl.u32 %v524, 7
        %v526 = vsub.s32 %v523, %v525
        %v527 = vrot.slane %v520, %v526
        %528 = vrot.lane.b32.xlu0 %v527, 18
        %v529 = vpop.permute.xlu0 %528
        %v530 = vrot.slane %v529, 6
        %vm531 = vcmask 146432
        %v532 = vsel %vm531, %v530, %v529
        %v534 = vmul.bf16 %v493, %v532
        %v536 = vcombine.low %v534, %v534
        %v538 = vunpack.c.l.s4 1983009808
        %v539 = vunpack.c.0.s8 %v538
        %v540 = vlaneseq
        %v541 = vshrl.u32 %v540, 7
        %v542 = vsub.s32 %v539, %v541
        %v543 = vrot.slane %v536, %v542
        %v545 = vunpack.c.l.s4 1983009808
        %v546 = vunpack.c.0.s8 %v545
        %v547 = vlaneseq
        %v548 = vshrl.u32 %v547, 7
        %v549 = vsub.s32 %v546, %v548
        %v550 = vrot.slane %v534, %v549
        %551 = vrot.lane.b32.xlu0 %v543, 110
        %v552 = vpop.permute.xlu0 %551
        %553 = vrot.lane.b32.xlu0 %v550, 110
        %v554 = vpop.permute.xlu0 %553
        %v555 = vrot.slane %v552, 4
        %v556 = vrot.slane %v554, 4
        %v557 = vsel %vm321, %v555, %v556
        %vm558 = vcmask 900096
        %v559 = vsel %vm558, %v552, %v557
        %561 = vst [vmem:[#allocation3 + $0x10] sm:$0xcc] %v559
        %v562 = vld [vmem:[#allocation2] sm:$0x3f]
        %v563 = vld [vmem:[%s3] sm:$0x5]
        %v566 = vunpack.c.l.s4 1983009808
        %v567 = vunpack.c.0.s8 %v566
        %v568 = vlaneseq
        %v569 = vshrl.u32 %v568, 7
        %v570 = vsub.s32 %v567, %v569
        %v571 = vrot.slane %v563, %v570
        %v572 = vcombine.high %v571, %v571
        %v574 = vpack.i.b16 %v571, %v571
        %v576 = vlaneseq
        %v577 = vshrl.u32 %v576, 7
        %v578 = vsub.s32 0, %v577
        %v579 = vrot.slane %v574, %v578
        %v581 = vpack.i.b16 %v572, %v572
        %v583 = vlaneseq
        %v584 = vshrl.u32 %v583, 7
        %v585 = vsub.s32 0, %v584
        %v586 = vrot.slane %v581, %v585
        %v589 = vcombine.low %v579, %v586
        %v591 = vunpack.c.l.s4 1983009808
        %v592 = vunpack.c.0.s8 %v591
        %v593 = vlaneseq
        %v594 = vshrl.u32 %v593, 7
        %v595 = vsub.s32 %v592, %v594
        %v596 = vrot.slane %v589, %v595
        %597 = vrot.lane.b32.xlu0 %v596, 32
        %v598 = vpop.permute.xlu0 %597
        %v599 = vrot.slane %v598, 6
        %vm600 = vcmask 261120
        %v601 = vsel %vm600, %v599, %v598
        %v603 = vmul.bf16 %v562, %v601
        %v605 = vcombine.high %v603, %v603
        %v607 = vunpack.c.l.s4 1983009808
        %v608 = vunpack.c.0.s8 %v607
        %v609 = vlaneseq
        %v610 = vshrl.u32 %v609, 7
        %v611 = vsub.s32 %v608, %v610
        %v612 = vrot.slane %v603, %v611
        %v614 = vunpack.c.l.s4 1983009808
        %v615 = vunpack.c.0.s8 %v614
        %v616 = vlaneseq
        %v617 = vshrl.u32 %v616, 7
        %v618 = vsub.s32 %v615, %v617
        %v619 = vrot.slane %v605, %v618
        %620 = vrot.lane.b32.xlu0 %v612, 96
        %v621 = vpop.permute.xlu0 %620
        %622 = vrot.lane.b32.xlu0 %v619, 96
        %v623 = vpop.permute.xlu0 %622
        %v624 = vrot.slane %v621, 4
        %v625 = vrot.slane %v623, 4
        %v626 = vsel %vm321, %v624, %v625
        %vm627 = vcmask 785408
        %v628 = vsel %vm627, %v621, %v626
        %630 = vst [vmem:[#allocation3 + $0x18] sm:$0x33] %v628
        %v631 = vld [vmem:[#allocation2] sm:$0x3f]
        %v633 = vcombine.low %v631, %v631
        %v635 = vunpack.c.l.s4 1983009808
        %v636 = vunpack.c.0.s8 %v635
        %v637 = vlaneseq
        %v638 = vshrl.u32 %v637, 7
        %v639 = vsub.s32 %v636, %v638
        %v640 = vrot.slane %v633, %v639
        %v642 = vunpack.c.l.s4 1983009808
        %v643 = vunpack.c.0.s8 %v642
        %v644 = vlaneseq
        %v645 = vshrl.u32 %v644, 7
        %v646 = vsub.s32 %v643, %v645
        %v647 = vrot.slane %v631, %v646
        %648 = vrot.lane.b32.xlu0 %v640, 95
        %v649 = vpop.permute.xlu0 %648
        %650 = vrot.lane.b32.xlu0 %v647, 95
        %v651 = vpop.permute.xlu0 %650
        %v652 = vrot.slane %v649, 4
        %v653 = vrot.slane %v651, 4
        %v654 = vsel %vm321, %v652, %v653
        %vm655 = vcmask 777216
        %v656 = vsel %vm655, %v649, %v654
        %658 = vst [vmem:[#allocation3 + $0x18] sm:$0xcc] %v656
        %v659 = vld [vmem:[#allocation2] sm:$0x3f]
        %v660 = vld [vmem:[%s3] sm:$0xa]
        %v663 = vunpack.c.l.s4 1983009808
        %v664 = vunpack.c.0.s8 %v663
        %v665 = vlaneseq
        %v666 = vshrl.u32 %v665, 7
        %v667 = vsub.s32 %v664, %v666
        %v668 = vrot.slane %v660, %v667
        %v669 = vcombine.high %v668, %v668
        %v671 = vpack.i.b16 %v668, %v668
        %v673 = vlaneseq
        %v674 = vshrl.u32 %v673, 7
        %v675 = vsub.s32 1, %v674
        %v676 = vrot.slane %v671, %v675
        %v678 = vpack.i.b16 %v669, %v669
        %v680 = vlaneseq
        %v681 = vshrl.u32 %v680, 7
        %v682 = vsub.s32 1, %v681
        %v683 = vrot.slane %v678, %v682
        %v686 = vcombine.low %v676, %v683
        %v688 = vunpack.c.l.s4 1983009808
        %v689 = vunpack.c.0.s8 %v688
        %v690 = vlaneseq
        %v691 = vshrl.u32 %v690, 7
        %v692 = vsub.s32 %v689, %v691
        %v693 = vrot.slane %v686, %v692
        %694 = vrot.lane.b32.xlu0 %v693, 34
        %v695 = vpop.permute.xlu0 %694
        %v696 = vrot.slane %v695, 6
        %vm697 = vcmask 277504
        %v698 = vsel %vm697, %v696, %v695
        %v700 = vmul.bf16 %v659, %v698
        %v702 = vcombine.high %v700, %v700
        %v704 = vunpack.c.l.s4 1983009808
        %v705 = vunpack.c.0.s8 %v704
        %v706 = vlaneseq
        %v707 = vshrl.u32 %v706, 7
        %v708 = vsub.s32 %v705, %v707
        %v709 = vrot.slane %v700, %v708
        %v711 = vunpack.c.l.s4 1983009808
        %v712 = vunpack.c.0.s8 %v711
        %v713 = vlaneseq
        %v714 = vshrl.u32 %v713, 7
        %v715 = vsub.s32 %v712, %v714
        %v716 = vrot.slane %v702, %v715
        %717 = vrot.lane.b32.xlu0 %v709, 94
        %v718 = vpop.permute.xlu0 %717
        %719 = vrot.lane.b32.xlu0 %v716, 94
        %v720 = vpop.permute.xlu0 %719
        %v721 = vrot.slane %v718, 4
        %v722 = vrot.slane %v720, 4
        %v723 = vsel %vm321, %v721, %v722
        %vm724 = vcmask 769024
        %v725 = vsel %vm724, %v718, %v723
        %727 = vst [vmem:[#allocation3 + $0x20] sm:$0x33] %v725
        %v728 = vld [vmem:[%s1] sm:$0x3]
        %v729 = vld [vmem:[#allocation3] sm:$0xff]
        %v730 = vld [vmem:[#allocation3 + $0x8] sm:$0xff]
        %v731 = vld [vmem:[#allocation3 + $0x10] sm:$0xff]
        %v732 = vld [vmem:[#allocation3 + $0x18] sm:$0xff]
        %v733 = vld [vmem:[#allocation3 + $0x20] sm:$0x33]
        %v734 = vld [vmem:[%s2] sm:$0xf]
        %736 = vset.pattern.permute.xlu0 0
        %737 = vperm.xlu0 %736, %v734
        %v738 = vpop.permute.xlu0 %737
        %v745 = vunpack.c.l.b16 %v729
        %v746 = vunpack.c.h.b16 %v729
        %v747 = vunpack.c.l.b16 %v730
        %v748 = vunpack.c.h.b16 %v730
        %v749 = vunpack.c.l.b16 %v731
        %v750 = vunpack.c.h.b16 %v731
        %v751 = vunpack.c.l.b16 %v732
        %v752 = vunpack.c.h.b16 %v732
        %v753 = vunpack.c.l.b16 %v733
        %v754 = vunpack.c.h.b16 %v733
        %v755 = vpack.c.b16 %v747, %v745
        %v756 = vpack.c.b16 %v748, %v746
        %v757 = vpack.c.b16 %v751, %v749
        %v758 = vpack.c.b16 %v752, %v750
        %v759 = vpack.c.b16 %v753, %v753
        %v760 = vpack.c.b16 %v754, %v754
        %vm765 = vcmask 293888
        %v767 = vsel %vm765, %v728, 0
        %vm769 = vcmask 1041408
        %v771 = vsel %vm769, %v759, 0
        %v774 = vsel %vm769, %v760, 0
        %776 = vmatprep.subr.bf16.mxu0 %v756
        %777 = vmatpush1.bf16.msra.mxu0 %v755
        %778 = vmatprep.subr.bf16.mxu0 %v758
        %779 = vmatpush1.bf16.msra.mxu0 %v757
        %780 = vmatprep.subr.bf16.mxu0 %v774
        %781 = vmatpush1.bf16.msra.mxu0 %v771
        %782 = vmatprep.subr.bf16.mxu0 0
        %783 = vmatpush1.bf16.msra.mxu0 0
        %784 = vmatprep.subr.bf16.mxu0 0
        %785 = vmatpush1.bf16.msra.mxu0 0
        %786 = vmatprep.subr.bf16.mxu0 0
        %787 = vmatpush1.bf16.msra.mxu0 0
        %788 = vmatprep.subr.bf16.mxu0 0
        %789 = vmatpush1.bf16.msra.mxu0 0
        %790 = vmatprep.subr.bf16.mxu0 0
        %791 = vmatpush1.bf16.msra.mxu0 0
        %792 = vmatprep.subr.bf16.mxu0 0
        %793 = vmatpush1.bf16.msra.mxu0 0
        %794 = vmatprep.subr.bf16.mxu0 0
        %795 = vmatpush1.bf16.msra.mxu0 0
        %796 = vmatprep.subr.bf16.mxu0 0
        %797 = vmatpush1.bf16.msra.mxu0 0
        %798 = vmatprep.subr.bf16.mxu0 0
        %799 = vmatpush1.bf16.msra.mxu0 0
        %800 = vmatprep.subr.bf16.mxu0 0
        %801 = vmatpush1.bf16.msra.mxu0 0
        %802 = vmatprep.subr.bf16.mxu0 0
        %803 = vmatpush1.bf16.msra.mxu0 0
        %804 = vmatprep.subr.bf16.mxu0 0
        %805 = vmatpush1.bf16.msra.mxu0 0
        %806 = vmatprep.subr.bf16.mxu0 0
        %807 = vmatpush1.bf16.msra.mxu0 0
        %808 = vmatprep.mubr.bf16.mxu0 0
        %809 = vmatmul.mubr.bf16.gmra.mrb[0].mxu0 %v767
        %v810 = vpop.f32.mrb[0].mxu0
        %v811 = vadd.f32 %v738, %v810
        %v812 = vpop.f32.mrb[0].mxu0
        %v813 = vadd.f32 %v738, %v812
        %v814 = vpop.f32.mrb[0].mxu0
        %v815 = vpop.f32.mrb[0].mxu0
        %816 = vdwg.mxu0
        %v817 = vmul.f32 %v811, 0.1
        %v818 = vmul.f32 %v813, 0.1
        %v819 = vmax.f32 %v811, %v817
        %v820 = vmax.f32 %v813, %v818
        %v823 = vcombine.low %v819, %v820
        %825 = vst [vmem:[%s213] sm:$0xff] %v823
        %s826 = sand.u32 %s118, 1
        %s827 = scalar_lea.sflag [#allocation6], %s826
        %s828 = sand.u32 %s118, 1
        %s829 = smul.addr %s828, 8
        %s830 = scalar_lea.vmem [#allocation7], %s829
        // Predicated region
        $region45: #{tpu_custom_call.1} parent=35 // pred_check
          %p831 = pneg %p128
        $region46: #{tpu_custom_call.1} parent=35 // pred_check_branch
          %833 = sbr.rel (%p831) target = $region48
        $region47: #{tpu_custom_call.1} parent=35 // pred_region
          %s835 = ssub.s32 128, 128
          %836 = vsyncadd %s827, %s835
          %s837 = smul.addr %s21, 2
          %s838 = smul.addr %s837, 64
          %s839 = scalar_lea.hbm %s4, %s838
          %s841 = sshll.u32 %s830, 4
          %s842 = int_to_ptr.vmem [resolvable:$true] %s841
          %844 = dma.vmem_to_hbm [thread:$0]  %s842, 128, %s839, %s827
        $region48: #{tpu_custom_call.1} parent=35 // pred_fallthru
          _
      $region36: #{tpu_custom_call.1} parent=5 // pred_fallthru
        _
      %p845 = scmp.le.s32.totalorder 2, %s16
      // Predicated region
      $region49: #{tpu_custom_call.1} parent=5 // pred_check
        %p846 = pneg %p845
      $region50: #{tpu_custom_call.1} parent=5 // pred_check_branch
        %848 = sbr.rel (%p846) target = $region52
      $region51: #{tpu_custom_call.1} parent=5 // pred_region
        %s849 = ssub.s32 %s16, 2
        // Predicated region
        $region53: #{tpu_custom_call.1} parent=51 // pred_check
          %p850 = pneg %p134
        $region54: #{tpu_custom_call.1} parent=51 // pred_check_branch
          %852 = sbr.rel (%p850) target = $region56
        $region55: #{tpu_custom_call.1} parent=51 // pred_region
          %s853 = sand.u32 %s119, 1
          %s854 = scalar_lea.sflag [#allocation6], %s853
          %s855 = sand.u32 %s119, 1
          %s856 = smul.addr %s855, 8
          %s857 = scalar_lea.vmem [#allocation7], %s856
          %858 = dma.done %s854, 128
        $region56: #{tpu_custom_call.1} parent=51 // pred_fallthru
          _
      $region52: #{tpu_custom_call.1} parent=5 // pred_fallthru
        _
    $region6: #{tpu_custom_call.1} parent=1 // loop_footer
      %s20 = sadd.s32 1, %s16
    $region7: #{tpu_custom_call.1} parent=1 // loop_footer_branch
      %15 = sbr.rel target = $region3
    $region8: #{tpu_custom_call.1} parent=1 // loop_exit
      _
    %859 = vsyncpa [#allocation5], 1
    %s860 = scalar_lea.sflag [#allocation5], 1
    %861 = vsyncpa %s860, 1
    %862 = vsyncpa [#allocation6], 1
    %s863 = scalar_lea.sflag [#allocation6], 1
    %864 = vsyncpa %s863, 1

</llo_original>
